<compile_context>
chip_gen: v5e
topology: v5e:2x2
jax: 0.10.0
libtpu: 0.0.40
codegen_flags: <defaults>
</compile_context>

<pallas_src>
import jax
import jax.numpy as jnp
from jax.experimental import pallas as pl
from jax.experimental.pallas import tpu as pltpu

IN_DIM = 14            # model input features
IN_PAD = 16            # zero-padded K for the first matmul
HID = 128
NEG_SLOPE = 0.01       # F.leaky_relu default
_MIN_SPLIT_ROWS = 1024  # only force >=2 grid steps once each step has >= this many rows


def _round_up(n, m):
    return ((n + m - 1) // m) * m


def _leaky_relu(x):
    # max(x, slope*x) == leaky_relu(x) for 0 <= slope <= 1  (mul + max, no select)
    return jnp.maximum(x, NEG_SLOPE * x)


def _mlp_kernel(x_ref, w1_ref, b1_ref, wh_ref, bh_ref, o_ref):
    # x_ref : (tb, 16)  f32     w1_ref: (16, 128)  bf16    b1_ref: (1, 128)  f32
    # wh_ref: (4,128,128) bf16  bh_ref: (4, 1,128) f32     o_ref : (tb, 128) out dtype
    x = x_ref[...].astype(jnp.bfloat16)
    h = jnp.dot(x, w1_ref[...], preferred_element_type=jnp.float32) + b1_ref[...]
    h = _leaky_relu(h)
    for li in range(4):  # layers 2..5, statically unrolled
        h = jnp.dot(h.astype(jnp.bfloat16), wh_ref[li],
                    preferred_element_type=jnp.float32) + bh_ref[li]
        h = _leaky_relu(h)
    o_ref[...] = h.astype(o_ref.dtype)


def _pick_batch_tile(B, tb):
    """16-aligned batch tile; guarantees >=2 grid steps once the batch is big."""
    b16 = _round_up(B, 16)
    tb_eff = min(tb, b16)
    if b16 >= 2 * _MIN_SPLIT_ROWS:
        # >=2 grid steps: shards across v7x's two TensorCores ("parallel" axis)
        # and overlaps DMA with compute on single-TC chips.
        tb_eff = min(tb_eff, _round_up((b16 + 1) // 2, 16))
    return _round_up(tb_eff, 16)


def vitalsign_feature_mel_thickness(x, params, *, tb=4096, out_dtype=jnp.float32):
    """x: (B, 14) float32. params: w1..w5 stored (in, out), b1..b5 stored (out,).

    Returns (B, 128) in `out_dtype` (default float32 == PyTorch semantics).
    Batch is internally padded to a multiple of the batch tile; padded rows are
    sliced off before returning.
    """
    B, D = x.shape
    assert D == IN_DIM

    # --- pack / pad parameters once (tiny arrays; wrapper-side) ---------------
    w1 = jnp.zeros((IN_PAD, HID), jnp.float32).at[:IN_DIM, :].set(
        params["w1"]).astype(jnp.bfloat16)                          # (16, 128)
    b1 = params["b1"].reshape(1, HID).astype(jnp.float32)           # (1, 128)
    wh = jnp.stack([params[f"w{i}"] for i in range(2, 6)]
                   ).astype(jnp.bfloat16)                           # (4, 128, 128)
    bh = jnp.stack([params[f"b{i}"].reshape(1, HID) for i in range(2, 6)]
                   ).astype(jnp.float32)                            # (4, 1, 128)

    # --- batch tiling ----------------------------------------------------------
    tb_eff = _pick_batch_tile(B, tb)
    B_pad = _round_up(B, tb_eff)
    grid = (B_pad // tb_eff,)

    # Single pad op: batch -> B_pad rows, features 14 -> 16 (zeros). x stays f32
    # in HBM; the bf16 cast happens inside the kernel.
    x_pad = jnp.pad(x, ((0, B_pad - B), (0, IN_PAD - IN_DIM)))

    weight_bytes = (w1.size + wh.size) * 2 + (b1.size + bh.size) * 4
    out_itemsize = jnp.dtype(out_dtype).itemsize
    cost = pl.CostEstimate(
        flops=2 * B_pad * (IN_PAD * HID + 4 * HID * HID),
        transcendentals=0,
        bytes_accessed=B_pad * IN_PAD * 4 + B_pad * HID * out_itemsize + weight_bytes,
    )

    out = pl.pallas_call(
        _mlp_kernel,
        out_shape=jax.ShapeDtypeStruct((B_pad, HID), out_dtype),
        grid_spec=pltpu.PrefetchScalarGridSpec(
            num_scalar_prefetch=0,
            grid=grid,
            in_specs=[
                pl.BlockSpec((tb_eff, IN_PAD), lambda i: (i, 0)),      # x tile (f32)
                pl.BlockSpec((IN_PAD, HID), lambda i: (0, 0)),         # w1 (resident)
                pl.BlockSpec((1, HID), lambda i: (0, 0)),              # b1
                pl.BlockSpec((4, HID, HID), lambda i: (0, 0, 0)),      # w2..w5
                pl.BlockSpec((4, 1, HID), lambda i: (0, 0, 0)),        # b2..b5
            ],
            out_specs=pl.BlockSpec((tb_eff, HID), lambda i: (i, 0)),
        ),
        compiler_params=pltpu.CompilerParams(
            dimension_semantics=("parallel",),
            vmem_limit_bytes=48 * 1024 * 1024,
        ),
        cost_estimate=cost,
    )(x_pad, w1, b1, wh, bh)

    return out[:B]


def init_params(key):
    """PyTorch-default uniform init; weights stored transposed as (in, out)."""
    dims = [(IN_DIM, HID), (HID, HID), (HID, HID), (HID, HID), (HID, HID)]
    params = {}
    for li, (fan_in, fan_out) in enumerate(dims, start=1):
        key, kw, kb = jax.random.split(key, 3)
        bound = 1.0 / jnp.sqrt(fan_in)
        params[f"w{li}"] = jax.random.uniform(
            kw, (fan_in, fan_out), jnp.float32, -bound, bound)
        params[f"b{li}"] = jax.random.uniform(
            kb, (fan_out,), jnp.float32, -bound, bound)
    return params


def reference_forward(x, params, *, quantize=False):
    """Pure-JAX reference. quantize=True mirrors the kernel's bf16 matmul inputs."""
    cast = (lambda a: a.astype(jnp.bfloat16)) if quantize else (lambda a: a)
    h = x
    for li in range(1, 6):
        w = params[f"w{li}"]
        b = params[f"b{li}"].reshape(1, -1)
        h = jnp.dot(cast(h), cast(w), preferred_element_type=jnp.float32) + b
        h = jnp.where(h > 0, h, NEG_SLOPE * h)
    return h


if __name__ == "__main__":
    key = jax.random.PRNGKey(0)
    key, kx1, kx2 = jax.random.split(key, 3)
    params = init_params(key)

    # Small ragged batch: single grid step, exercises batch + feature padding.
    x_small = jax.random.normal(kx1, (37, IN_DIM), jnp.float32)
    # Larger ragged batch: exercises the >=2-step "parallel" grid path.
    x_big = jax.random.normal(kx2, (2500, IN_DIM), jnp.float32)

    cases = [
        (x_small, 1e-3, 5e-2),
        (x_big, 2e-3, 1e-1),
    ]
    for xb, bf16_tol, f32_tol in cases:
        out = jax.block_until_ready(vitalsign_feature_mel_thickness(xb, params))
        assert out.shape == (xb.shape[0], HID)
        assert out.dtype == jnp.float32
        # Tight vs a reference with identical bf16 matmul-input quantization.
        ref_bf16 = reference_forward(xb, params, quantize=True)
        assert jnp.allclose(out, ref_bf16, atol=bf16_tol, rtol=bf16_tol)
        # Loose vs the full-f32 reference (bf16 rounding across 5 layers).
        ref_f32 = reference_forward(xb, params, quantize=False)
        assert jnp.allclose(out, ref_f32, atol=f32_tol, rtol=f32_tol)

    # Tiny explicit tile -> multi-step grid on the small batch as well.
    out_multi = jax.block_until_ready(
        vitalsign_feature_mel_thickness(x_small, params, tb=16))
    assert jnp.allclose(out_multi, reference_forward(x_small, params, quantize=True),
                        atol=1e-3, rtol=1e-3)

    print("KERNEL_OK")
</pallas_src>

<mosaic_0001>
module attributes {stable_mosaic.version = 11 : i64} {
  func.func @_mlp_kernel(%arg0: i32, %arg1: memref<48x16xf32, #tpu.memory_space<vmem>>, %arg2: memref<16x128xbf16, #tpu.memory_space<vmem>>, %arg3: memref<1x128xf32, #tpu.memory_space<vmem>>, %arg4: memref<4x128x128xbf16, #tpu.memory_space<vmem>>, %arg5: memref<4x1x128xf32, #tpu.memory_space<vmem>>, %arg6: memref<48x128xf32, #tpu.memory_space<vmem>>) attributes {dimension_semantics = [#tpu.dimension_semantics<parallel>], iteration_bounds = array<i64: 1>, scalar_prefetch = 0 : i64, scratch_operands = 0 : i64, tpu.core_type = #tpu.core_type<tc>, window_params = [{transform_indices = @transform_0, window_bounds = array<i64: 48, 16>}, {pipeline_mode = #tpu.pipeline_mode<synchronous>, transform_indices = @transform_1, window_bounds = array<i64: 16, 128>}, {pipeline_mode = #tpu.pipeline_mode<synchronous>, transform_indices = @transform_2, window_bounds = array<i64: 1, 128>}, {pipeline_mode = #tpu.pipeline_mode<synchronous>, transform_indices = @transform_3, window_bounds = array<i64: 4, 128, 128>}, {pipeline_mode = #tpu.pipeline_mode<synchronous>, transform_indices = @transform_4, window_bounds = array<i64: 4, 1, 128>}, {transform_indices = @transform_5, window_bounds = array<i64: 48, 128>}]} {
    %c0 = arith.constant 0 : index
    %c0_0 = arith.constant 0 : index
    %0 = vector.load %arg1[%c0, %c0_0] : memref<48x16xf32, #tpu.memory_space<vmem>>, vector<48x16xf32>
    %1 = arith.truncf %0 : vector<48x16xf32> to vector<48x16xbf16>
    %c0_1 = arith.constant 0 : index
    %c0_2 = arith.constant 0 : index
    %2 = vector.load %arg2[%c0_1, %c0_2] : memref<16x128xbf16, #tpu.memory_space<vmem>>, vector<16x128xbf16>
    %cst = arith.constant dense<0.000000e+00> : vector<48x128xf32>
    %3 = tpu.matmul %1, %2, %cst {dimension_numbers = #tpu.dot_dimension_numbers<[1], [0], [0], [1], [0, 0, 1, 1], [], []>} : vector<48x16xbf16>, vector<16x128xbf16>, vector<48x128xf32> -> vector<48x128xf32>
    %c0_3 = arith.constant 0 : index
    %c0_4 = arith.constant 0 : index
    %4 = vector.load %arg3[%c0_3, %c0_4] : memref<1x128xf32, #tpu.memory_space<vmem>>, vector<1x128xf32>
    %5 = vector.broadcast %4 : vector<1x128xf32> to vector<48x128xf32>
    %6 = arith.addf %3, %5 : vector<48x128xf32>
    %cst_5 = arith.constant 0.00999999977 : f32
    %7 = vector.broadcast %cst_5 : f32 to vector<48x128xf32>
    %8 = arith.mulf %7, %6 : vector<48x128xf32>
    %9 = arith.maximumf %6, %8 : vector<48x128xf32>
    %10 = arith.truncf %9 : vector<48x128xf32> to vector<48x128xbf16>
    %c0_6 = arith.constant 0 : index
    %c0_7 = arith.constant 0 : index
    %c0_8 = arith.constant 0 : index
    %11 = vector.load %arg4[%c0_6, %c0_7, %c0_8] : memref<4x128x128xbf16, #tpu.memory_space<vmem>>, vector<1x128x128xbf16>
    %12 = vector.shape_cast %11 : vector<1x128x128xbf16> to vector<128x128xbf16>
    %cst_9 = arith.constant dense<0.000000e+00> : vector<48x128xf32>
    %13 = tpu.matmul %10, %12, %cst_9 {dimension_numbers = #tpu.dot_dimension_numbers<[1], [0], [0], [1], [0, 0, 1, 1], [], []>} : vector<48x128xbf16>, vector<128x128xbf16>, vector<48x128xf32> -> vector<48x128xf32>
    %c0_10 = arith.constant 0 : index
    %c0_11 = arith.constant 0 : index
    %c0_12 = arith.constant 0 : index
    %14 = vector.load %arg5[%c0_10, %c0_11, %c0_12] : memref<4x1x128xf32, #tpu.memory_space<vmem>>, vector<1x1x128xf32>
    %15 = vector.shape_cast %14 : vector<1x1x128xf32> to vector<1x128xf32>
    %16 = vector.broadcast %15 : vector<1x128xf32> to vector<48x128xf32>
    %17 = arith.addf %13, %16 : vector<48x128xf32>
    %cst_13 = arith.constant 0.00999999977 : f32
    %18 = vector.broadcast %cst_13 : f32 to vector<48x128xf32>
    %19 = arith.mulf %18, %17 : vector<48x128xf32>
    %20 = arith.maximumf %17, %19 : vector<48x128xf32>
    %21 = arith.truncf %20 : vector<48x128xf32> to vector<48x128xbf16>
    %c1 = arith.constant 1 : index
    %c0_14 = arith.constant 0 : index
    %c0_15 = arith.constant 0 : index
    %22 = vector.load %arg4[%c1, %c0_14, %c0_15] : memref<4x128x128xbf16, #tpu.memory_space<vmem>>, vector<1x128x128xbf16>
    %23 = vector.shape_cast %22 : vector<1x128x128xbf16> to vector<128x128xbf16>
    %cst_16 = arith.constant dense<0.000000e+00> : vector<48x128xf32>
    %24 = tpu.matmul %21, %23, %cst_16 {dimension_numbers = #tpu.dot_dimension_numbers<[1], [0], [0], [1], [0, 0, 1, 1], [], []>} : vector<48x128xbf16>, vector<128x128xbf16>, vector<48x128xf32> -> vector<48x128xf32>
    %c1_17 = arith.constant 1 : index
    %c0_18 = arith.constant 0 : index
    %c0_19 = arith.constant 0 : index
    %25 = vector.load %arg5[%c1_17, %c0_18, %c0_19] : memref<4x1x128xf32, #tpu.memory_space<vmem>>, vector<1x1x128xf32>
    %26 = vector.shape_cast %25 : vector<1x1x128xf32> to vector<1x128xf32>
    %27 = vector.broadcast %26 : vector<1x128xf32> to vector<48x128xf32>
    %28 = arith.addf %24, %27 : vector<48x128xf32>
    %cst_20 = arith.constant 0.00999999977 : f32
    %29 = vector.broadcast %cst_20 : f32 to vector<48x128xf32>
    %30 = arith.mulf %29, %28 : vector<48x128xf32>
    %31 = arith.maximumf %28, %30 : vector<48x128xf32>
    %32 = arith.truncf %31 : vector<48x128xf32> to vector<48x128xbf16>
    %c2 = arith.constant 2 : index
    %c0_21 = arith.constant 0 : index
    %c0_22 = arith.constant 0 : index
    %33 = vector.load %arg4[%c2, %c0_21, %c0_22] : memref<4x128x128xbf16, #tpu.memory_space<vmem>>, vector<1x128x128xbf16>
    %34 = vector.shape_cast %33 : vector<1x128x128xbf16> to vector<128x128xbf16>
    %cst_23 = arith.constant dense<0.000000e+00> : vector<48x128xf32>
    %35 = tpu.matmul %32, %34, %cst_23 {dimension_numbers = #tpu.dot_dimension_numbers<[1], [0], [0], [1], [0, 0, 1, 1], [], []>} : vector<48x128xbf16>, vector<128x128xbf16>, vector<48x128xf32> -> vector<48x128xf32>
    %c2_24 = arith.constant 2 : index
    %c0_25 = arith.constant 0 : index
    %c0_26 = arith.constant 0 : index
    %36 = vector.load %arg5[%c2_24, %c0_25, %c0_26] : memref<4x1x128xf32, #tpu.memory_space<vmem>>, vector<1x1x128xf32>
    %37 = vector.shape_cast %36 : vector<1x1x128xf32> to vector<1x128xf32>
    %38 = vector.broadcast %37 : vector<1x128xf32> to vector<48x128xf32>
    %39 = arith.addf %35, %38 : vector<48x128xf32>
    %cst_27 = arith.constant 0.00999999977 : f32
    %40 = vector.broadcast %cst_27 : f32 to vector<48x128xf32>
    %41 = arith.mulf %40, %39 : vector<48x128xf32>
    %42 = arith.maximumf %39, %41 : vector<48x128xf32>
    %43 = arith.truncf %42 : vector<48x128xf32> to vector<48x128xbf16>
    %c3 = arith.constant 3 : index
    %c0_28 = arith.constant 0 : index
    %c0_29 = arith.constant 0 : index
    %44 = vector.load %arg4[%c3, %c0_28, %c0_29] : memref<4x128x128xbf16, #tpu.memory_space<vmem>>, vector<1x128x128xbf16>
    %45 = vector.shape_cast %44 : vector<1x128x128xbf16> to vector<128x128xbf16>
    %cst_30 = arith.constant dense<0.000000e+00> : vector<48x128xf32>
    %46 = tpu.matmul %43, %45, %cst_30 {dimension_numbers = #tpu.dot_dimension_numbers<[1], [0], [0], [1], [0, 0, 1, 1], [], []>} : vector<48x128xbf16>, vector<128x128xbf16>, vector<48x128xf32> -> vector<48x128xf32>
    %c3_31 = arith.constant 3 : index
    %c0_32 = arith.constant 0 : index
    %c0_33 = arith.constant 0 : index
    %47 = vector.load %arg5[%c3_31, %c0_32, %c0_33] : memref<4x1x128xf32, #tpu.memory_space<vmem>>, vector<1x1x128xf32>
    %48 = vector.shape_cast %47 : vector<1x1x128xf32> to vector<1x128xf32>
    %49 = vector.broadcast %48 : vector<1x128xf32> to vector<48x128xf32>
    %50 = arith.addf %46, %49 : vector<48x128xf32>
    %cst_34 = arith.constant 0.00999999977 : f32
    %51 = vector.broadcast %cst_34 : f32 to vector<48x128xf32>
    %52 = arith.mulf %51, %50 : vector<48x128xf32>
    %53 = arith.maximumf %50, %52 : vector<48x128xf32>
    %c0_35 = arith.constant 0 : index
    %c0_36 = arith.constant 0 : index
    %54 = vector.load %arg6[%c0_35, %c0_36] : memref<48x128xf32, #tpu.memory_space<vmem>>, vector<48x128xf32>
    tpu.vector_store %arg6[%c0_35, %c0_36], %53 {strides = array<i32>} : memref<48x128xf32, #tpu.memory_space<vmem>>, vector<48x128xf32>,
    return
  }
  func.func @transform_0(%arg0: i32) -> (i32, i32) {
    %c0_i32 = arith.constant 0 : i32
    %c0_i32_0 = arith.constant 0 : i32
    return %arg0, %c0_i32 : i32, i32
  }
  func.func @transform_1(%arg0: i32) -> (i32, i32) {
    %c0_i32 = arith.constant 0 : i32
    %c0_i32_0 = arith.constant 0 : i32
    %c0_i32_1 = arith.constant 0 : i32
    return %c0_i32, %c0_i32_0 : i32, i32
  }
  func.func @transform_2(%arg0: i32) -> (i32, i32) {
    %c0_i32 = arith.constant 0 : i32
    %c0_i32_0 = arith.constant 0 : i32
    %c0_i32_1 = arith.constant 0 : i32
    return %c0_i32, %c0_i32_0 : i32, i32
  }
  func.func @transform_3(%arg0: i32) -> (i32, i32, i32) {
    %c0_i32 = arith.constant 0 : i32
    %c0_i32_0 = arith.constant 0 : i32
    %c0_i32_1 = arith.constant 0 : i32
    %c0_i32_2 = arith.constant 0 : i32
    return %c0_i32, %c0_i32_0, %c0_i32_1 : i32, i32, i32
  }
  func.func @transform_4(%arg0: i32) -> (i32, i32, i32) {
    %c0_i32 = arith.constant 0 : i32
    %c0_i32_0 = arith.constant 0 : i32
    %c0_i32_1 = arith.constant 0 : i32
    %c0_i32_2 = arith.constant 0 : i32
    return %c0_i32, %c0_i32_0, %c0_i32_1 : i32, i32, i32
  }
  func.func @transform_5(%arg0: i32) -> (i32, i32) {
    %c0_i32 = arith.constant 0 : i32
    %c0_i32_0 = arith.constant 0 : i32
    return %arg0, %c0_i32 : i32, i32
  }
}

</mosaic_0001>

<llo_original>
// kernel: tpu_custom_call.1
$region0: #{tpu_custom_call.1}
  #allocation0 [shape = 'u32[]', space=smem, size = 0x4, offset = 0x4, fixed_abs, tag = 'smem constant byte address 0x4 - core index']
  #allocation1 [shape = 'u32[72,128]{1,0:T(1,128)}', space=vmem, size = 0x9000, scoped, tag = 'internal scratch']
  %s0 = inlined_call_operand.vmem [shape: f32[48,16], index: 0, kind: input, shape index: {}]
  %s1 = inlined_call_operand.vmem [shape: bf16[16,128], index: 1, kind: input, shape index: {}]
  %s2 = inlined_call_operand.vmem [shape: f32[1,128], index: 2, kind: input, shape index: {}]
  %s3 = inlined_call_operand.hbm [shape: bf16[4,128,128], index: 3, kind: input, shape index: {}]
  %s4 = inlined_call_operand.vmem [shape: f32[4,1,128], index: 4, kind: input, shape index: {}]
  %s5 = inlined_call_operand.hbm [shape: f32[48,128], index: 5, kind: output, shape index: {}]
  %s6 = sld [smem:[#allocation0]]
  $region34: #{tpu_custom_call.1} parent=0
    _
  %s8 = ssub.s32 1, %s6
  %s9 = scalar_select 0, %s8, %s6
  $region1: #{tpu_custom_call.1} parent=0
    #allocation2 [shape = 'u8[131072]{0}', space=vmem, size = 0x20000, scoped, tag = 'input window, operand 3, single buffered']
    #allocation3 [shape = 's32[1]{0}', space=sflag, size = 0x4, scoped, tag = 'scoped memory for tpu_custom_call.1']
    #allocation4 [shape = 's32[1]{0}', space=sflag, size = 0x4, scoped, tag = 'scoped memory for tpu_custom_call.1']
    #allocation5 [shape = 'u8[24576]{0}', space=vmem, size = 0x6000, scoped, tag = 'output window, operand 0, single buffered']
    %10 = vsyncpa [#allocation3], 0
    %11 = vsyncpa [#allocation4], 0
    // Predicated region
    $region2: #{tpu_custom_call.1} parent=1 // pred_check
      _
    $region3: #{tpu_custom_call.1} parent=1 // pred_check_branch
      %13 = sbr.rel (0) target = $region5
    $region4: #{tpu_custom_call.1} parent=1 // pred_region
      _
    $region5: #{tpu_custom_call.1} parent=1 // pred_fallthru
      _
    // Predicated region
    $region6: #{tpu_custom_call.1} parent=1 // pred_check
      _
    $region7: #{tpu_custom_call.1} parent=1 // pred_check_branch
      %15 = sbr.rel (0) target = $region9
    $region8: #{tpu_custom_call.1} parent=1 // pred_region
      _
    $region9: #{tpu_custom_call.1} parent=1 // pred_fallthru
      _
    // Predicated region
    $region10: #{tpu_custom_call.1} parent=1 // pred_check
      _
    $region11: #{tpu_custom_call.1} parent=1 // pred_check_branch
      %17 = sbr.rel (0) target = $region13
    $region12: #{tpu_custom_call.1} parent=1 // pred_region
      _
    $region13: #{tpu_custom_call.1} parent=1 // pred_fallthru
      _
    // Predicated region
    $region14: #{tpu_custom_call.1} parent=1 // pred_check
      _
    $region15: #{tpu_custom_call.1} parent=1 // pred_check_branch
      %19 = sbr.rel (0) target = $region17
    $region16: #{tpu_custom_call.1} parent=1 // pred_region
      %21 = vsyncadd [#allocation3], 0
      %s22 = sshll.u32 %s3, 4
      %s23 = int_to_ptr.hbm [resolvable:$true] %s22
      %s24 = sshll.u32 [#allocation2], 4
      %s25 = int_to_ptr.vmem [resolvable:$true] %s24
      %30 = dma.hbm_to_vmem [thread:$0]  %s23, 4096, %s25, [#allocation3], 64, 64, 4
    $region17: #{tpu_custom_call.1} parent=1 // pred_fallthru
      _
    // Predicated region
    $region18: #{tpu_custom_call.1} parent=1 // pred_check
      _
    $region19: #{tpu_custom_call.1} parent=1 // pred_check_branch
      %32 = sbr.rel (0) target = $region21
    $region20: #{tpu_custom_call.1} parent=1 // pred_region
      _
    $region21: #{tpu_custom_call.1} parent=1 // pred_fallthru
      _
    // Predicated region
    $region22: #{tpu_custom_call.1} parent=1 // pred_check
      _
    $region23: #{tpu_custom_call.1} parent=1 // pred_check_branch
      %34 = sbr.rel (0) target = $region25
    $region24: #{tpu_custom_call.1} parent=1 // pred_region
      %36 = dma.done [#allocation3], 4096
    $region25: #{tpu_custom_call.1} parent=1 // pred_fallthru
      _
    %v38 = vld [vmem:[%s0] sm:$0xff]
    %v39 = vld [vmem:[%s0 + $0x8] sm:$0xff]
    %v40 = vld [vmem:[%s0 + $0x10] sm:$0xff]
    %v41 = vld [vmem:[%s0 + $0x18] sm:$0xff]
    %v42 = vld [vmem:[%s0 + $0x20] sm:$0xff]
    %v43 = vld [vmem:[%s0 + $0x28] sm:$0xff]
    %v44 = vpack.c.bf16 %v39, %v38
    %v45 = vpack.c.bf16 %v41, %v40
    %v46 = vpack.c.bf16 %v43, %v42
    %v47 = vld [vmem:[%s1] sm:$0xf]
    %v48 = vld [vmem:[%s1 + $0x4] sm:$0xf]
    %v49 = vld [vmem:[%s2] sm:$0x1]
    %v51 = vperm.slane %v49, 0
    %v55 = vunpack.c.l.b16 %v47
    %v56 = vunpack.c.l.b16 %v48
    %v57 = vpack.c.b16 %v56, %v55
    %vm59 = vcmask 130048
    %v61 = vsel %vm59, %v44, 0
    %v64 = vsel %vm59, %v45, 0
    %v67 = vsel %vm59, %v46, 0
    %69 = vmatpush.bf16.msra.mxu0 0
    %70 = vmatpush.bf16.msra.mxu0 0
    %71 = vmatpush.bf16.msra.mxu0 0
    %72 = vmatpush.bf16.msra.mxu0 0
    %73 = vmatpush.bf16.msra.mxu0 0
    %74 = vmatpush.bf16.msra.mxu0 0
    %75 = vmatpush.bf16.msra.mxu0 0
    %76 = vmatpush.bf16.msra.mxu0 %v57
    %77 = vmatmul.bf16.gmra.mxu0 %v61
    %v78 = vpop.f32.mrf.mxu0
    %v79 = vadd.f32 %v51, %v78
    %v80 = vpop.f32.mrf.mxu0
    %v81 = vadd.f32 %v51, %v80
    %82 = vmatmul.bf16.gmra.mxu0 %v64
    %v83 = vpop.f32.mrf.mxu0
    %v84 = vadd.f32 %v51, %v83
    %v85 = vpop.f32.mrf.mxu0
    %v86 = vadd.f32 %v51, %v85
    %87 = vmatmul.bf16.gmra.mxu0 %v67
    %v88 = vpop.f32.mrf.mxu0
    %v89 = vadd.f32 %v51, %v88
    %v90 = vpop.f32.mrf.mxu0
    %v91 = vadd.f32 %v51, %v90
    %92 = vdwg.mxu0
    %v93 = vmul.f32 %v79, 0.01
    %v94 = vmul.f32 %v81, 0.01
    %v95 = vmul.f32 %v84, 0.01
    %v96 = vmul.f32 %v86, 0.01
    %v97 = vmul.f32 %v89, 0.01
    %v98 = vmul.f32 %v91, 0.01
    %v99 = vmax.f32 %v79, %v93
    %v100 = vmax.f32 %v81, %v94
    %v101 = vmax.f32 %v84, %v95
    %v102 = vmax.f32 %v86, %v96
    %v103 = vmax.f32 %v89, %v97
    %v104 = vmax.f32 %v91, %v98
    %v105 = vpack.c.bf16 %v100, %v99
    %v106 = vpack.c.bf16 %v102, %v101
    %v107 = vpack.c.bf16 %v104, %v103
    %v108 = vld [vmem:[#allocation2] sm:$0xf]
    %v109 = vld [vmem:[#allocation2 + $0x4] sm:$0xf]
    %v110 = vld [vmem:[#allocation2 + $0x8] sm:$0xf]
    %v111 = vld [vmem:[#allocation2 + $0xc] sm:$0xf]
    %v112 = vld [vmem:[#allocation2 + $0x10] sm:$0xf]
    %v113 = vld [vmem:[#allocation2 + $0x14] sm:$0xf]
    %v114 = vld [vmem:[#allocation2 + $0x18] sm:$0xf]
    %v115 = vld [vmem:[#allocation2 + $0x1c] sm:$0xf]
    %v116 = vld [vmem:[#allocation2 + $0x20] sm:$0xf]
    %v117 = vld [vmem:[#allocation2 + $0x24] sm:$0xf]
    %v118 = vld [vmem:[#allocation2 + $0x28] sm:$0xf]
    %v119 = vld [vmem:[#allocation2 + $0x2c] sm:$0xf]
    %v120 = vld [vmem:[#allocation2 + $0x30] sm:$0xf]
    %v121 = vld [vmem:[#allocation2 + $0x34] sm:$0xf]
    %v122 = vld [vmem:[#allocation2 + $0x38] sm:$0xf]
    %v123 = vld [vmem:[#allocation2 + $0x3c] sm:$0xf]
    %v124 = vld [vmem:[%s4] sm:$0x1]
    %v126 = vperm.slane %v124, 0
    %v144 = vunpack.c.l.b16 %v108
    %v145 = vunpack.c.l.b16 %v109
    %v146 = vunpack.c.l.b16 %v110
    %v147 = vunpack.c.l.b16 %v111
    %v148 = vunpack.c.l.b16 %v112
    %v149 = vunpack.c.l.b16 %v113
    %v150 = vunpack.c.l.b16 %v114
    %v151 = vunpack.c.l.b16 %v115
    %v152 = vunpack.c.l.b16 %v116
    %v153 = vunpack.c.l.b16 %v117
    %v154 = vunpack.c.l.b16 %v118
    %v155 = vunpack.c.l.b16 %v119
    %v156 = vunpack.c.l.b16 %v120
    %v157 = vunpack.c.l.b16 %v121
    %v158 = vunpack.c.l.b16 %v122
    %v159 = vunpack.c.l.b16 %v123
    %v160 = vpack.c.b16 %v145, %v144
    %v161 = vpack.c.b16 %v147, %v146
    %v162 = vpack.c.b16 %v149, %v148
    %v163 = vpack.c.b16 %v151, %v150
    %v164 = vpack.c.b16 %v153, %v152
    %v165 = vpack.c.b16 %v155, %v154
    %v166 = vpack.c.b16 %v157, %v156
    %v167 = vpack.c.b16 %v159, %v158
    %176 = vmatpush.bf16.msra.mxu0 %v167
    %177 = vmatpush.bf16.msra.mxu0 %v166
    %178 = vmatpush.bf16.msra.mxu0 %v165
    %179 = vmatpush.bf16.msra.mxu0 %v164
    %180 = vmatpush.bf16.msra.mxu0 %v163
    %181 = vmatpush.bf16.msra.mxu0 %v162
    %182 = vmatpush.bf16.msra.mxu0 %v161
    %183 = vmatpush.bf16.msra.mxu0 %v160
    %184 = vmatmul.bf16.gmra.mxu0 %v105
    %v185 = vpop.f32.mrf.mxu0
    %v186 = vadd.f32 %v126, %v185
    %v187 = vpop.f32.mrf.mxu0
    %v188 = vadd.f32 %v126, %v187
    %189 = vmatmul.bf16.gmra.mxu0 %v106
    %v190 = vpop.f32.mrf.mxu0
    %v191 = vadd.f32 %v126, %v190
    %v192 = vpop.f32.mrf.mxu0
    %v193 = vadd.f32 %v126, %v192
    %194 = vmatmul.bf16.gmra.mxu0 %v107
    %v195 = vpop.f32.mrf.mxu0
    %v196 = vadd.f32 %v126, %v195
    %v197 = vpop.f32.mrf.mxu0
    %v198 = vadd.f32 %v126, %v197
    %199 = vdwg.mxu0
    %v200 = vmul.f32 %v186, 0.01
    %v201 = vmul.f32 %v188, 0.01
    %v202 = vmul.f32 %v191, 0.01
    %v203 = vmul.f32 %v193, 0.01
    %v204 = vmul.f32 %v196, 0.01
    %v205 = vmul.f32 %v198, 0.01
    %v206 = vmax.f32 %v186, %v200
    %v207 = vmax.f32 %v188, %v201
    %v208 = vmax.f32 %v191, %v202
    %v209 = vmax.f32 %v193, %v203
    %v210 = vmax.f32 %v196, %v204
    %v211 = vmax.f32 %v198, %v205
    %v212 = vpack.c.bf16 %v207, %v206
    %v213 = vpack.c.bf16 %v209, %v208
    %v214 = vpack.c.bf16 %v211, %v210
    %s215 = scalar_lea.vmem [#allocation2], 64
    %v216 = vld [vmem:[%s215] sm:$0xf]
    %v217 = vld [vmem:[%s215 + $0x4] sm:$0xf]
    %v218 = vld [vmem:[%s215 + $0x8] sm:$0xf]
    %v219 = vld [vmem:[%s215 + $0xc] sm:$0xf]
    %v220 = vld [vmem:[%s215 + $0x10] sm:$0xf]
    %v221 = vld [vmem:[%s215 + $0x14] sm:$0xf]
    %v222 = vld [vmem:[%s215 + $0x18] sm:$0xf]
    %v223 = vld [vmem:[%s215 + $0x1c] sm:$0xf]
    %v224 = vld [vmem:[%s215 + $0x20] sm:$0xf]
    %v225 = vld [vmem:[%s215 + $0x24] sm:$0xf]
    %v226 = vld [vmem:[%s215 + $0x28] sm:$0xf]
    %v227 = vld [vmem:[%s215 + $0x2c] sm:$0xf]
    %v228 = vld [vmem:[%s215 + $0x30] sm:$0xf]
    %v229 = vld [vmem:[%s215 + $0x34] sm:$0xf]
    %v230 = vld [vmem:[%s215 + $0x38] sm:$0xf]
    %v231 = vld [vmem:[%s215 + $0x3c] sm:$0xf]
    %s232 = scalar_lea.vmem %s4, 1
    %v233 = vld [vmem:[%s232] sm:$0x1]
    %v235 = vperm.slane %v233, 0
    %v253 = vunpack.c.l.b16 %v216
    %v254 = vunpack.c.l.b16 %v217
    %v255 = vunpack.c.l.b16 %v218
    %v256 = vunpack.c.l.b16 %v219
    %v257 = vunpack.c.l.b16 %v220
    %v258 = vunpack.c.l.b16 %v221
    %v259 = vunpack.c.l.b16 %v222
    %v260 = vunpack.c.l.b16 %v223
    %v261 = vunpack.c.l.b16 %v224
    %v262 = vunpack.c.l.b16 %v225
    %v263 = vunpack.c.l.b16 %v226
    %v264 = vunpack.c.l.b16 %v227
    %v265 = vunpack.c.l.b16 %v228
    %v266 = vunpack.c.l.b16 %v229
    %v267 = vunpack.c.l.b16 %v230
    %v268 = vunpack.c.l.b16 %v231
    %v269 = vpack.c.b16 %v254, %v253
    %v270 = vpack.c.b16 %v256, %v255
    %v271 = vpack.c.b16 %v258, %v257
    %v272 = vpack.c.b16 %v260, %v259
    %v273 = vpack.c.b16 %v262, %v261
    %v274 = vpack.c.b16 %v264, %v263
    %v275 = vpack.c.b16 %v266, %v265
    %v276 = vpack.c.b16 %v268, %v267
    %285 = vmatpush.bf16.msra.mxu0 %v276
    %286 = vmatpush.bf16.msra.mxu0 %v275
    %287 = vmatpush.bf16.msra.mxu0 %v274
    %288 = vmatpush.bf16.msra.mxu0 %v273
    %289 = vmatpush.bf16.msra.mxu0 %v272
    %290 = vmatpush.bf16.msra.mxu0 %v271
    %291 = vmatpush.bf16.msra.mxu0 %v270
    %292 = vmatpush.bf16.msra.mxu0 %v269
    %293 = vmatmul.bf16.gmra.mxu0 %v212
    %v294 = vpop.f32.mrf.mxu0
    %v295 = vadd.f32 %v235, %v294
    %v296 = vpop.f32.mrf.mxu0
    %v297 = vadd.f32 %v235, %v296
    %298 = vmatmul.bf16.gmra.mxu0 %v213
    %v299 = vpop.f32.mrf.mxu0
    %v300 = vadd.f32 %v235, %v299
    %v301 = vpop.f32.mrf.mxu0
    %v302 = vadd.f32 %v235, %v301
    %303 = vmatmul.bf16.gmra.mxu0 %v214
    %v304 = vpop.f32.mrf.mxu0
    %v305 = vadd.f32 %v235, %v304
    %v306 = vpop.f32.mrf.mxu0
    %v307 = vadd.f32 %v235, %v306
    %308 = vdwg.mxu0
    %v309 = vmul.f32 %v295, 0.01
    %v310 = vmul.f32 %v297, 0.01
    %v311 = vmul.f32 %v300, 0.01
    %v312 = vmul.f32 %v302, 0.01
    %v313 = vmul.f32 %v305, 0.01
    %v314 = vmul.f32 %v307, 0.01
    %v315 = vmax.f32 %v295, %v309
    %v316 = vmax.f32 %v297, %v310
    %v317 = vmax.f32 %v300, %v311
    %v318 = vmax.f32 %v302, %v312
    %v319 = vmax.f32 %v305, %v313
    %v320 = vmax.f32 %v307, %v314
    %v321 = vpack.c.bf16 %v316, %v315
    %v322 = vpack.c.bf16 %v318, %v317
    %v323 = vpack.c.bf16 %v320, %v319
    %s324 = scalar_lea.vmem [#allocation2], 128
    %v325 = vld [vmem:[%s324] sm:$0xf]
    %v326 = vld [vmem:[%s324 + $0x4] sm:$0xf]
    %v327 = vld [vmem:[%s324 + $0x8] sm:$0xf]
    %v328 = vld [vmem:[%s324 + $0xc] sm:$0xf]
    %v329 = vld [vmem:[%s324 + $0x10] sm:$0xf]
    %v330 = vld [vmem:[%s324 + $0x14] sm:$0xf]
    %v331 = vld [vmem:[%s324 + $0x18] sm:$0xf]
    %v332 = vld [vmem:[%s324 + $0x1c] sm:$0xf]
    %v333 = vld [vmem:[%s324 + $0x20] sm:$0xf]
    %v334 = vld [vmem:[%s324 + $0x24] sm:$0xf]
    %v335 = vld [vmem:[%s324 + $0x28] sm:$0xf]
    %v336 = vld [vmem:[%s324 + $0x2c] sm:$0xf]
    %v337 = vld [vmem:[%s324 + $0x30] sm:$0xf]
    %v338 = vld [vmem:[%s324 + $0x34] sm:$0xf]
    %v339 = vld [vmem:[%s324 + $0x38] sm:$0xf]
    %v340 = vld [vmem:[%s324 + $0x3c] sm:$0xf]
    %s341 = scalar_lea.vmem %s4, 2
    %v342 = vld [vmem:[%s341] sm:$0x1]
    %v344 = vperm.slane %v342, 0
    %v362 = vunpack.c.l.b16 %v325
    %v363 = vunpack.c.l.b16 %v326
    %v364 = vunpack.c.l.b16 %v327
    %v365 = vunpack.c.l.b16 %v328
    %v366 = vunpack.c.l.b16 %v329
    %v367 = vunpack.c.l.b16 %v330
    %v368 = vunpack.c.l.b16 %v331
    %v369 = vunpack.c.l.b16 %v332
    %v370 = vunpack.c.l.b16 %v333
    %v371 = vunpack.c.l.b16 %v334
    %v372 = vunpack.c.l.b16 %v335
    %v373 = vunpack.c.l.b16 %v336
    %v374 = vunpack.c.l.b16 %v337
    %v375 = vunpack.c.l.b16 %v338
    %v376 = vunpack.c.l.b16 %v339
    %v377 = vunpack.c.l.b16 %v340
    %v378 = vpack.c.b16 %v363, %v362
    %v379 = vpack.c.b16 %v365, %v364
    %v380 = vpack.c.b16 %v367, %v366
    %v381 = vpack.c.b16 %v369, %v368
    %v382 = vpack.c.b16 %v371, %v370
    %v383 = vpack.c.b16 %v373, %v372
    %v384 = vpack.c.b16 %v375, %v374
    %v385 = vpack.c.b16 %v377, %v376
    %394 = vmatpush.bf16.msra.mxu0 %v385
    %395 = vmatpush.bf16.msra.mxu0 %v384
    %396 = vmatpush.bf16.msra.mxu0 %v383
    %397 = vmatpush.bf16.msra.mxu0 %v382
    %398 = vmatpush.bf16.msra.mxu0 %v381
    %399 = vmatpush.bf16.msra.mxu0 %v380
    %400 = vmatpush.bf16.msra.mxu0 %v379
    %401 = vmatpush.bf16.msra.mxu0 %v378
    %402 = vmatmul.bf16.gmra.mxu0 %v321
    %v403 = vpop.f32.mrf.mxu0
    %v404 = vadd.f32 %v344, %v403
    %v405 = vpop.f32.mrf.mxu0
    %v406 = vadd.f32 %v344, %v405
    %407 = vmatmul.bf16.gmra.mxu0 %v322
    %v408 = vpop.f32.mrf.mxu0
    %v409 = vadd.f32 %v344, %v408
    %v410 = vpop.f32.mrf.mxu0
    %v411 = vadd.f32 %v344, %v410
    %412 = vmatmul.bf16.gmra.mxu0 %v323
    %v413 = vpop.f32.mrf.mxu0
    %v414 = vadd.f32 %v344, %v413
    %v415 = vpop.f32.mrf.mxu0
    %v416 = vadd.f32 %v344, %v415
    %417 = vdwg.mxu0
    %v418 = vmul.f32 %v404, 0.01
    %v419 = vmul.f32 %v406, 0.01
    %v420 = vmul.f32 %v409, 0.01
    %v421 = vmul.f32 %v411, 0.01
    %v422 = vmul.f32 %v414, 0.01
    %v423 = vmul.f32 %v416, 0.01
    %v424 = vmax.f32 %v404, %v418
    %v425 = vmax.f32 %v406, %v419
    %v426 = vmax.f32 %v409, %v420
    %v427 = vmax.f32 %v411, %v421
    %v428 = vmax.f32 %v414, %v422
    %v429 = vmax.f32 %v416, %v423
    %v430 = vpack.c.bf16 %v425, %v424
    %v431 = vpack.c.bf16 %v427, %v426
    %v432 = vpack.c.bf16 %v429, %v428
    %s433 = scalar_lea.vmem [#allocation2], 192
    %v434 = vld [vmem:[%s433] sm:$0xf]
    %v435 = vld [vmem:[%s433 + $0x4] sm:$0xf]
    %v436 = vld [vmem:[%s433 + $0x8] sm:$0xf]
    %v437 = vld [vmem:[%s433 + $0xc] sm:$0xf]
    %v438 = vld [vmem:[%s433 + $0x10] sm:$0xf]
    %v439 = vld [vmem:[%s433 + $0x14] sm:$0xf]
    %v440 = vld [vmem:[%s433 + $0x18] sm:$0xf]
    %v441 = vld [vmem:[%s433 + $0x1c] sm:$0xf]
    %v442 = vld [vmem:[%s433 + $0x20] sm:$0xf]
    %v443 = vld [vmem:[%s433 + $0x24] sm:$0xf]
    %v444 = vld [vmem:[%s433 + $0x28] sm:$0xf]
    %v445 = vld [vmem:[%s433 + $0x2c] sm:$0xf]
    %v446 = vld [vmem:[%s433 + $0x30] sm:$0xf]
    %v447 = vld [vmem:[%s433 + $0x34] sm:$0xf]
    %v448 = vld [vmem:[%s433 + $0x38] sm:$0xf]
    %v449 = vld [vmem:[%s433 + $0x3c] sm:$0xf]
    %s450 = scalar_lea.vmem %s4, 3
    %v451 = vld [vmem:[%s450] sm:$0x1]
    %v453 = vperm.slane %v451, 0
    %v471 = vunpack.c.l.b16 %v434
    %v472 = vunpack.c.l.b16 %v435
    %v473 = vunpack.c.l.b16 %v436
    %v474 = vunpack.c.l.b16 %v437
    %v475 = vunpack.c.l.b16 %v438
    %v476 = vunpack.c.l.b16 %v439
    %v477 = vunpack.c.l.b16 %v440
    %v478 = vunpack.c.l.b16 %v441
    %v479 = vunpack.c.l.b16 %v442
    %v480 = vunpack.c.l.b16 %v443
    %v481 = vunpack.c.l.b16 %v444
    %v482 = vunpack.c.l.b16 %v445
    %v483 = vunpack.c.l.b16 %v446
    %v484 = vunpack.c.l.b16 %v447
    %v485 = vunpack.c.l.b16 %v448
    %v486 = vunpack.c.l.b16 %v449
    %v487 = vpack.c.b16 %v472, %v471
    %v488 = vpack.c.b16 %v474, %v473
    %v489 = vpack.c.b16 %v476, %v475
    %v490 = vpack.c.b16 %v478, %v477
    %v491 = vpack.c.b16 %v480, %v479
    %v492 = vpack.c.b16 %v482, %v481
    %v493 = vpack.c.b16 %v484, %v483
    %v494 = vpack.c.b16 %v486, %v485
    %503 = vmatpush.bf16.msra.mxu0 %v494
    %504 = vmatpush.bf16.msra.mxu0 %v493
    %505 = vmatpush.bf16.msra.mxu0 %v492
    %506 = vmatpush.bf16.msra.mxu0 %v491
    %507 = vmatpush.bf16.msra.mxu0 %v490
    %508 = vmatpush.bf16.msra.mxu0 %v489
    %509 = vmatpush.bf16.msra.mxu0 %v488
    %510 = vmatpush.bf16.msra.mxu0 %v487
    %511 = vmatmul.bf16.gmra.mxu0 %v430
    %v512 = vpop.f32.mrf.mxu0
    %v513 = vadd.f32 %v453, %v512
    %v514 = vpop.f32.mrf.mxu0
    %v515 = vadd.f32 %v453, %v514
    %516 = vmatmul.bf16.gmra.mxu0 %v431
    %v517 = vpop.f32.mrf.mxu0
    %v518 = vadd.f32 %v453, %v517
    %v519 = vpop.f32.mrf.mxu0
    %v520 = vadd.f32 %v453, %v519
    %521 = vmatmul.bf16.gmra.mxu0 %v432
    %v522 = vpop.f32.mrf.mxu0
    %v523 = vadd.f32 %v453, %v522
    %v524 = vpop.f32.mrf.mxu0
    %v525 = vadd.f32 %v453, %v524
    %526 = vdwg.mxu0
    %v527 = vmul.f32 %v513, 0.01
    %v528 = vmul.f32 %v515, 0.01
    %v529 = vmul.f32 %v518, 0.01
    %v530 = vmul.f32 %v520, 0.01
    %v531 = vmul.f32 %v523, 0.01
    %v532 = vmul.f32 %v525, 0.01
    %v533 = vmax.f32 %v513, %v527
    %v534 = vmax.f32 %v515, %v528
    %v535 = vmax.f32 %v518, %v529
    %v536 = vmax.f32 %v520, %v530
    %v537 = vmax.f32 %v523, %v531
    %v538 = vmax.f32 %v525, %v532
    %539 = vst [vmem:[#allocation5] sm:$0xff] %v533
    %540 = vst [vmem:[#allocation5 + $0x8] sm:$0xff] %v534
    %541 = vst [vmem:[#allocation5 + $0x10] sm:$0xff] %v535
    %542 = vst [vmem:[#allocation5 + $0x18] sm:$0xff] %v536
    %543 = vst [vmem:[#allocation5 + $0x20] sm:$0xff] %v537
    %544 = vst [vmem:[#allocation5 + $0x28] sm:$0xff] %v538
    // Predicated region
    $region26: #{tpu_custom_call.1} parent=1 // pred_check
      _
    $region27: #{tpu_custom_call.1} parent=1 // pred_check_branch
      %546 = sbr.rel (0) target = $region29
    $region28: #{tpu_custom_call.1} parent=1 // pred_region
      %548 = vsyncadd [#allocation4], 0
      %s549 = sshll.u32 [#allocation5], 4
      %s550 = int_to_ptr.vmem [resolvable:$true] %s549
      %s551 = sshll.u32 %s5, 4
      %s552 = int_to_ptr.hbm [resolvable:$true] %s551
      %557 = dma.vmem_to_hbm [thread:$0]  %s550, 768, %s552, [#allocation4], 128, 128, 8
    $region29: #{tpu_custom_call.1} parent=1 // pred_fallthru
      _
    // Predicated region
    $region30: #{tpu_custom_call.1} parent=1 // pred_check
      _
    $region31: #{tpu_custom_call.1} parent=1 // pred_check_branch
      %559 = sbr.rel (0) target = $region33
    $region32: #{tpu_custom_call.1} parent=1 // pred_region
      %561 = dma.done [#allocation4], 768
    $region33: #{tpu_custom_call.1} parent=1 // pred_fallthru
      _
    %562 = vsyncpa [#allocation3], 1
    %563 = vsyncpa [#allocation4], 1

</llo_original>
